<compile_context>
chip_gen: v6e
topology: v6e:2x2x1
jax: 0.10.0
libtpu: 0.0.40
codegen_flags: <defaults>
</compile_context>

<pallas_src>
import functools

import jax
import jax.numpy as jnp
from jax.experimental import pallas as pl
from jax.experimental.pallas import tpu as pltpu

EPS = 1e-5          # nn.BatchNorm2d default eps
NEG_SLOPE = 0.1     # nn.LeakyReLU(negative_slope=0.1)

VMEM_LIMIT = 32 * 1024 * 1024   # safe on v5e/v6e (128 MiB) and v7x (64 MiB phys)


def conv_stats_kernel(p_ref, w_ref, y_ref, stats_ref):
    """Per M-tile: conv matmul + per-channel partial sum / sum-of-squares."""
    y = jnp.dot(p_ref[...], w_ref[...], preferred_element_type=jnp.float32)
    y_ref[...] = y
    s = jnp.sum(y, axis=0, keepdims=True)          # (1, Cout)
    ss = jnp.sum(y * y, axis=0, keepdims=True)     # (1, Cout)
    stats_ref[...] = jnp.concatenate([s, ss], axis=0)   # (2, Cout) partial


def bn_lrelu_kernel(y_ref, stats_ref, g_ref, beta_ref, o_ref, *, inv_m):
    """Per M-tile: folded BatchNorm(train) affine + LeakyReLU(0.1)."""
    mean = stats_ref[0:1, :] * inv_m                      # (1, Cout)
    var = stats_ref[1:2, :] * inv_m - mean * mean         # biased (PyTorch train)
    s = g_ref[...] * jax.lax.rsqrt(var + EPS)             # per-channel scale
    t = beta_ref[...] - mean * s                          # per-channel offset
    z = y_ref[...] * s + t                                # 2 VPU ops / element
    o_ref[...] = jnp.where(z >= 0.0, z, NEG_SLOPE * z)


def _round_up(x, m):
    return ((x + m - 1) // m) * m


@functools.partial(jax.jit, static_argnames=("stride", "pad"))
def convnet_forward(x_nchw, w, b, gamma, beta, stride=1, pad=1):
    """x_nchw: (N, Cin, H, W) f32; w: (Cout, Cin, KH, KW); b/gamma/beta: (Cout,)."""
    del b  # conv bias is an exact no-op before train-mode BatchNorm (cancels in y - mean)

    N, Cin, H, W = x_nchw.shape
    Cout, _, KH, KW = w.shape
    OH = (H + 2 * pad - KH) // stride + 1
    OW = (W + 2 * pad - KW) // stride + 1
    M = N * OH * OW
    K = KH * KW * Cin

    # ---- thin XLA glue: im2col (NCHW -> NHWC -> (M, K) patches) ----
    # TODO(synk): an in-kernel im2col (halo DMA over NHWC tiles) would remove the
    # KH*KW-fold patch expansion in HBM; kept as glue here for clarity/robustness.
    x = jnp.transpose(x_nchw, (0, 2, 3, 1)).astype(jnp.float32)        # NHWC
    xp = jnp.pad(x, ((0, 0), (pad, pad), (pad, pad), (0, 0)))
    cols = []
    for kh in range(KH):
        for kw in range(KW):
            cols.append(xp[:,
                           kh:kh + (OH - 1) * stride + 1:stride,
                           kw:kw + (OW - 1) * stride + 1:stride,
                           :])                                          # (N,OH,OW,Cin)
    patches = jnp.concatenate(cols, axis=-1).reshape(M, K)

    # weight matrix matching the (kh, kw, cin) column order of `patches`
    w2 = jnp.transpose(w, (2, 3, 1, 0)).reshape(K, Cout).astype(jnp.float32)
    g2 = gamma.reshape(1, Cout).astype(jnp.float32)
    b2 = beta.reshape(1, Cout).astype(jnp.float32)

    # ---- M tiling (no K / Cout padding in HBM; only row padding to a tile) ----
    # TM = 256: double-buffered f32 tiles ~ 2*(TM*K + 2*TM*Cout)*4 B (~0.1 MiB
    # here), comfortably inside the explicit 32 MiB VMEM limit even on v7x.
    TM = min(256, _round_up(M, 8))
    M_pad = _round_up(M, TM)
    if M_pad != M:
        # zero rows contribute exactly 0 to sum/sumsq, so stats stay correct.
        patches = jnp.pad(patches, ((0, M_pad - M), (0, 0)))
    nt = M_pad // TM

    cp = pltpu.CompilerParams(dimension_semantics=("parallel",),
                              vmem_limit_bytes=VMEM_LIMIT)

    # ---- pass 1: conv matmul + per-tile partial statistics ----
    y_full, stats_part = pl.pallas_call(
        conv_stats_kernel,
        grid=(nt,),
        in_specs=[
            pl.BlockSpec((TM, K), lambda i: (i, 0)),       # full-extent K (=36)
            pl.BlockSpec((K, Cout), lambda i: (0, 0)),     # resident weights
        ],
        out_specs=[
            pl.BlockSpec((TM, Cout), lambda i: (i, 0)),            # conv output y
            pl.BlockSpec((None, 2, Cout), lambda i: (i, 0, 0)),    # per-tile stats
        ],
        out_shape=(
            jax.ShapeDtypeStruct((M_pad, Cout), jnp.float32),
            jax.ShapeDtypeStruct((nt, 2, Cout), jnp.float32),
        ),
        compiler_params=cp,
    )(patches, w2)

    # tiny combine of the partial statistics (nt x 2 x Cout -> 2 x Cout)
    stats = jnp.sum(stats_part, axis=0)

    # ---- pass 2: folded BN (batch stats) + LeakyReLU ----
    out = pl.pallas_call(
        functools.partial(bn_lrelu_kernel, inv_m=1.0 / M),
        grid=(nt,),
        in_specs=[
            pl.BlockSpec((TM, Cout), lambda i: (i, 0)),
            pl.BlockSpec((2, Cout), lambda i: (0, 0)),
            pl.BlockSpec((1, Cout), lambda i: (0, 0)),
            pl.BlockSpec((1, Cout), lambda i: (0, 0)),
        ],
        out_specs=pl.BlockSpec((TM, Cout), lambda i: (i, 0)),
        out_shape=jax.ShapeDtypeStruct((M_pad, Cout), jnp.float32),
        compiler_params=cp,
    )(y_full, stats, g2, b2)

    y = out[:M].reshape(N, OH, OW, Cout)
    return jnp.transpose(y, (0, 3, 1, 2))                  # back to NCHW


def reference_forward(x, w, b, gamma, beta, stride, pad):
    """Pure-JAX reference matching PyTorch ConvNet.forward (training-mode BN)."""
    y = jax.lax.conv_general_dilated(
        x, w, (stride, stride), [(pad, pad), (pad, pad)],
        dimension_numbers=("NCHW", "OIHW", "NCHW"))
    y = y + b[None, :, None, None]
    mean = jnp.mean(y, axis=(0, 2, 3), keepdims=True)
    var = jnp.mean((y - mean) ** 2, axis=(0, 2, 3), keepdims=True)
    yhat = (y - mean) * jax.lax.rsqrt(var + EPS)
    z = yhat * gamma[None, :, None, None] + beta[None, :, None, None]
    return jnp.where(z >= 0, z, NEG_SLOPE * z)


if __name__ == "__main__":
    # ConvNet(in_channels=4, out_channels=8, kernel_size=3, stride=1, pad=1)
    N, Cin, H, W = 2, 4, 16, 16
    Cout, KH, KW = 8, 3, 3
    stride, pad = 1, 1

    key = jax.random.PRNGKey(0)
    kx, kw_, kb, kg, kbeta = jax.random.split(key, 5)
    x = jax.random.normal(kx, (N, Cin, H, W), jnp.float32)
    w = 0.1 * jax.random.normal(kw_, (Cout, Cin, KH, KW), jnp.float32)
    b = 0.1 * jax.random.normal(kb, (Cout,), jnp.float32)
    gamma = 1.0 + 0.1 * jax.random.normal(kg, (Cout,), jnp.float32)
    beta = 0.1 * jax.random.normal(kbeta, (Cout,), jnp.float32)

    out = convnet_forward(x, w, b, gamma, beta, stride=stride, pad=pad)
    out = jax.block_until_ready(out)

    ref = reference_forward(x, w, b, gamma, beta, stride, pad)
    assert out.shape == (N, Cout, H, W), out.shape
    max_err = float(jnp.max(jnp.abs(out - ref)))
    assert jnp.allclose(out, ref, atol=1e-4, rtol=1e-4), max_err

    print("KERNEL_OK")
</pallas_src>

<mosaic_0001>
module attributes {stable_mosaic.version = 11 : i64} {
  func.func @conv_stats_kernel(%arg0: i32, %arg1: memref<256x36xf32, #tpu.memory_space<vmem>>, %arg2: memref<36x8xf32, #tpu.memory_space<vmem>>, %arg3: memref<256x8xf32, #tpu.memory_space<vmem>>, %arg4: memref<1x2x8xf32, #tpu.memory_space<vmem>>) attributes {dimension_semantics = [#tpu.dimension_semantics<parallel>], iteration_bounds = array<i64: 2>, scalar_prefetch = 0 : i64, scratch_operands = 0 : i64, tpu.core_type = #tpu.core_type<tc>, window_params = [{transform_indices = @transform_0, window_bounds = array<i64: 256, 36>}, {pipeline_mode = #tpu.pipeline_mode<synchronous>, transform_indices = @transform_1, window_bounds = array<i64: 36, 8>}, {transform_indices = @transform_2, window_bounds = array<i64: 256, 8>}, {transform_indices = @transform_3, window_bounds = array<i64: 1, 2, 8>}]} {
    %c0 = arith.constant 0 : index
    %c0_0 = arith.constant 0 : index
    %0 = vector.load %arg1[%c0, %c0_0] : memref<256x36xf32, #tpu.memory_space<vmem>>, vector<256x36xf32>
    %c0_1 = arith.constant 0 : index
    %c0_2 = arith.constant 0 : index
    %1 = vector.load %arg2[%c0_1, %c0_2] : memref<36x8xf32, #tpu.memory_space<vmem>>, vector<36x8xf32>
    %cst = arith.constant dense<0.000000e+00> : vector<256x8xf32>
    %2 = tpu.matmul %0, %1, %cst {dimension_numbers = #tpu.dot_dimension_numbers<[1], [0], [0], [1], [0, 0, 1, 1], [], []>} : vector<256x36xf32>, vector<36x8xf32>, vector<256x8xf32> -> vector<256x8xf32>
    %c0_3 = arith.constant 0 : index
    %c0_4 = arith.constant 0 : index
    %3 = vector.load %arg3[%c0_3, %c0_4] : memref<256x8xf32, #tpu.memory_space<vmem>>, vector<256x8xf32>
    tpu.vector_store %arg3[%c0_3, %c0_4], %2 {strides = array<i32>} : memref<256x8xf32, #tpu.memory_space<vmem>>, vector<256x8xf32>,
    %cst_5 = arith.constant dense<0.000000e+00> : vector<8xf32>
    %4 = vector.multi_reduction <add>, %2, %cst_5 [0] : vector<256x8xf32> to vector<8xf32>
    %5 = vector.shape_cast %4 : vector<8xf32> to vector<1x8xf32>
    %6 = arith.mulf %2, %2 : vector<256x8xf32>
    %cst_6 = arith.constant dense<0.000000e+00> : vector<8xf32>
    %7 = vector.multi_reduction <add>, %6, %cst_6 [0] : vector<256x8xf32> to vector<8xf32>
    %8 = vector.shape_cast %7 : vector<8xf32> to vector<1x8xf32>
    %9 = tpu.concatenate %5, %8 in 0 : vector<1x8xf32>, vector<1x8xf32> -> vector<2x8xf32>
    %c0_7 = arith.constant 0 : index
    %c0_8 = arith.constant 0 : index
    %c0_9 = arith.constant 0 : index
    %10 = vector.load %arg4[%c0_7, %c0_8, %c0_9] : memref<1x2x8xf32, #tpu.memory_space<vmem>>, vector<1x2x8xf32>
    %11 = vector.shape_cast %10 : vector<1x2x8xf32> to vector<2x8xf32>
    %12 = vector.shape_cast %9 : vector<2x8xf32> to vector<1x2x8xf32>
    tpu.vector_store %arg4[%c0_7, %c0_8, %c0_9], %12 {strides = array<i32>} : memref<1x2x8xf32, #tpu.memory_space<vmem>>, vector<1x2x8xf32>,
    return
  }
  func.func @transform_0(%arg0: i32) -> (i32, i32) {
    %c0_i32 = arith.constant 0 : i32
    %c0_i32_0 = arith.constant 0 : i32
    return %arg0, %c0_i32 : i32, i32
  }
  func.func @transform_1(%arg0: i32) -> (i32, i32) {
    %c0_i32 = arith.constant 0 : i32
    %c0_i32_0 = arith.constant 0 : i32
    %c0_i32_1 = arith.constant 0 : i32
    return %c0_i32, %c0_i32_0 : i32, i32
  }
  func.func @transform_2(%arg0: i32) -> (i32, i32) {
    %c0_i32 = arith.constant 0 : i32
    %c0_i32_0 = arith.constant 0 : i32
    return %arg0, %c0_i32 : i32, i32
  }
  func.func @transform_3(%arg0: i32) -> (i32, i32, i32) {
    %c0_i32 = arith.constant 0 : i32
    %c0_i32_0 = arith.constant 0 : i32
    %c0_i32_1 = arith.constant 0 : i32
    return %arg0, %c0_i32, %c0_i32_0 : i32, i32, i32
  }
}

module attributes {stable_mosaic.version = 11 : i64} {
  func.func @bn_lrelu_kernel(%arg0: i32, %arg1: memref<256x8xf32, #tpu.memory_space<vmem>>, %arg2: memref<2x8xf32, #tpu.memory_space<vmem>>, %arg3: memref<1x8xf32, #tpu.memory_space<vmem>>, %arg4: memref<1x8xf32, #tpu.memory_space<vmem>>, %arg5: memref<256x8xf32, #tpu.memory_space<vmem>>) attributes {dimension_semantics = [#tpu.dimension_semantics<parallel>], iteration_bounds = array<i64: 2>, scalar_prefetch = 0 : i64, scratch_operands = 0 : i64, tpu.core_type = #tpu.core_type<tc>, window_params = [{transform_indices = @transform_0, window_bounds = array<i64: 256, 8>}, {pipeline_mode = #tpu.pipeline_mode<synchronous>, transform_indices = @transform_1, window_bounds = array<i64: 2, 8>}, {pipeline_mode = #tpu.pipeline_mode<synchronous>, transform_indices = @transform_2, window_bounds = array<i64: 1, 8>}, {pipeline_mode = #tpu.pipeline_mode<synchronous>, transform_indices = @transform_3, window_bounds = array<i64: 1, 8>}, {transform_indices = @transform_4, window_bounds = array<i64: 256, 8>}]} {
    %c0 = arith.constant 0 : index
    %c0_0 = arith.constant 0 : index
    %0 = vector.load %arg2[%c0, %c0_0] : memref<2x8xf32, #tpu.memory_space<vmem>>, vector<1x8xf32>
    %cst = arith.constant 0.001953125 : f32
    %1 = vector.broadcast %cst : f32 to vector<1x8xf32>
    %2 = arith.mulf %0, %1 : vector<1x8xf32>
    %c1 = arith.constant 1 : index
    %c0_1 = arith.constant 0 : index
    %3 = vector.load %arg2[%c1, %c0_1] : memref<2x8xf32, #tpu.memory_space<vmem>>, vector<1x8xf32>
    %cst_2 = arith.constant 0.001953125 : f32
    %4 = vector.broadcast %cst_2 : f32 to vector<1x8xf32>
    %5 = arith.mulf %3, %4 : vector<1x8xf32>
    %6 = arith.mulf %2, %2 : vector<1x8xf32>
    %7 = arith.subf %5, %6 : vector<1x8xf32>
    %c0_3 = arith.constant 0 : index
    %c0_4 = arith.constant 0 : index
    %8 = vector.load %arg3[%c0_3, %c0_4] : memref<1x8xf32, #tpu.memory_space<vmem>>, vector<1x8xf32>
    %cst_5 = arith.constant 9.99999974E-6 : f32
    %9 = vector.broadcast %cst_5 : f32 to vector<1x8xf32>
    %10 = arith.addf %7, %9 : vector<1x8xf32>
    %11 = math.rsqrt %10 : vector<1x8xf32>
    %12 = arith.mulf %8, %11 : vector<1x8xf32>
    %c0_6 = arith.constant 0 : index
    %c0_7 = arith.constant 0 : index
    %13 = vector.load %arg4[%c0_6, %c0_7] : memref<1x8xf32, #tpu.memory_space<vmem>>, vector<1x8xf32>
    %14 = arith.mulf %2, %12 : vector<1x8xf32>
    %15 = arith.subf %13, %14 : vector<1x8xf32>
    %c0_8 = arith.constant 0 : index
    %c0_9 = arith.constant 0 : index
    %16 = vector.load %arg1[%c0_8, %c0_9] : memref<256x8xf32, #tpu.memory_space<vmem>>, vector<256x8xf32>
    %17 = vector.broadcast %12 : vector<1x8xf32> to vector<256x8xf32>
    %18 = arith.mulf %16, %17 : vector<256x8xf32>
    %19 = vector.broadcast %15 : vector<1x8xf32> to vector<256x8xf32>
    %20 = arith.addf %18, %19 : vector<256x8xf32>
    %cst_10 = arith.constant 0.000000e+00 : f32
    %21 = vector.broadcast %cst_10 : f32 to vector<256x8xf32>
    %22 = arith.cmpf oge, %20, %21 : vector<256x8xf32>
    %cst_11 = arith.constant 1.000000e-01 : f32
    %23 = vector.broadcast %cst_11 : f32 to vector<256x8xf32>
    %24 = arith.mulf %23, %20 : vector<256x8xf32>
    %25 = arith.select %22, %20, %24 : vector<256x8xi1>, vector<256x8xf32>
    %c0_12 = arith.constant 0 : index
    %c0_13 = arith.constant 0 : index
    %26 = vector.load %arg5[%c0_12, %c0_13] : memref<256x8xf32, #tpu.memory_space<vmem>>, vector<256x8xf32>
    tpu.vector_store %arg5[%c0_12, %c0_13], %25 {strides = array<i32>} : memref<256x8xf32, #tpu.memory_space<vmem>>, vector<256x8xf32>,
    return
  }
  func.func @transform_0(%arg0: i32) -> (i32, i32) {
    %c0_i32 = arith.constant 0 : i32
    %c0_i32_0 = arith.constant 0 : i32
    return %arg0, %c0_i32 : i32, i32
  }
  func.func @transform_1(%arg0: i32) -> (i32, i32) {
    %c0_i32 = arith.constant 0 : i32
    %c0_i32_0 = arith.constant 0 : i32
    %c0_i32_1 = arith.constant 0 : i32
    return %c0_i32, %c0_i32_0 : i32, i32
  }
  func.func @transform_2(%arg0: i32) -> (i32, i32) {
    %c0_i32 = arith.constant 0 : i32
    %c0_i32_0 = arith.constant 0 : i32
    %c0_i32_1 = arith.constant 0 : i32
    return %c0_i32, %c0_i32_0 : i32, i32
  }
  func.func @transform_3(%arg0: i32) -> (i32, i32) {
    %c0_i32 = arith.constant 0 : i32
    %c0_i32_0 = arith.constant 0 : i32
    %c0_i32_1 = arith.constant 0 : i32
    return %c0_i32, %c0_i32_0 : i32, i32
  }
  func.func @transform_4(%arg0: i32) -> (i32, i32) {
    %c0_i32 = arith.constant 0 : i32
    %c0_i32_0 = arith.constant 0 : i32
    return %arg0, %c0_i32 : i32, i32
  }
}

</mosaic_0001>

<llo_original>
// kernel: convnet_forward.2
$region0: #{convnet_forward.2}
  #allocation0 [shape = 'u32[]', space=smem, size = 0x4, offset = 0x4, fixed_abs, tag = 'smem constant byte address 0x4 - core index']
  #allocation1 [shape = 'u32[144,128]{1,0:T(1,128)}', space=vmem, size = 0x12000, scoped, tag = 'internal scratch']
  %s0 = inlined_call_operand.vmem [shape: f32[512,36], index: 0, kind: input, shape index: {}]
  %s1 = inlined_call_operand.vmem [shape: f32[36,8], index: 1, kind: input, shape index: {}]
  %s2 = inlined_call_operand.vmem [shape: f32[512,8], index: 2, kind: output, shape index: {0}]
  %s3 = inlined_call_operand.vmem [shape: f32[2,2,8], index: 3, kind: output, shape index: {1}]
  %4 = xla_tuple %s2, %s3
  %s5 = sld [smem:[#allocation0]]
  $region49: #{convnet_forward.2} parent=0
    _
  %s7 = ssub.s32 1, %s5
  %s8 = scalar_select 0, %s7, %s5
  loop: start=0, step=1, limit=4
  $region2: #{convnet_forward.2} parent=0 // loop_pre_header
    _
  $region3: #{convnet_forward.2} parent=0 // loop_header
    %s10 = sphi 0, %s14
    %p11 = scmp.ge.s32.totalorder %s10, 4
    %s20 = sphi 0, %s22
    %s23 = sphi 0, %s20
    %s24 = sphi 0, %s23
    %s40 = sphi 0, %s24
    %s44 = sphi 0, %s44
    %s46 = sphi 0, %s44
    %s47 = sphi 0, %s46
    %s61 = sphi 0, %s47
    %s67 = sphi 0, %s69
    %s70 = sphi 0, %s67
    %s71 = sphi 0, %s70
    %s87 = sphi 0, %s71
    %s93 = sphi 0, %s95
    %s96 = sphi 0, %s93
    %s97 = sphi 0, %s96
    %s113 = sphi 0, %s97
  $region4: #{convnet_forward.2} parent=0 // loop_header_branch
    %13 = sbr.rel (%p11) target = $region8
  $region5: #{convnet_forward.2} parent=0 // loop_body
    %s15 = ssub.s32 %s10, 1
    %s16 = ssub.s32 %s10, 2
    %s17 = sadd.s32 %s10, 1
    %s18 = ssub.s32 %s10, %s17
    %p19 = scmp.eq.s32.totalorder %s18, 0
    %s21 = sadd.s32 %s20, 1
    %s22 = scalar_select %p19, %s20, %s21
    %p25 = pneg %p19
    %p26 = scmp.eq.s32.totalorder %s10, 1
    %p27 = por %p25, %p26
    %p28 = scmp.ne.s32.totalorder %s20, %s23
    %p29 = scmp.eq.s32.totalorder %s10, 0
    %p30 = por %p28, %p29
    %p31 = scmp.ne.s32.totalorder %s20, %s23
    %p32 = scmp.eq.s32.totalorder %s15, 1
    %p33 = por %p31, %p32
    %p34 = scmp.ne.s32.totalorder %s23, %s24
    %p35 = scmp.eq.s32.totalorder %s15, 0
    %p36 = por %p34, %p35
    %p37 = scmp.ne.s32.totalorder %s23, %s24
    %p38 = scmp.eq.s32.totalorder %s16, 1
    %p39 = por %p37, %p38
    %p41 = scmp.ne.s32.totalorder %s24, %s40
    %p42 = scmp.eq.s32.totalorder %s16, 0
    %p43 = por %p41, %p42
    %s45 = sadd.s32 %s44, 1
    %p48 = scmp.eq.s32.totalorder %s10, 1
    %p49 = scmp.ne.s32.totalorder %s44, %s46
    %p50 = scmp.eq.s32.totalorder %s10, 0
    %p51 = por %p49, %p50
    %p52 = scmp.ne.s32.totalorder %s44, %s46
    %p53 = scmp.eq.s32.totalorder %s15, 1
    %p54 = por %p52, %p53
    %p55 = scmp.ne.s32.totalorder %s46, %s47
    %p56 = scmp.eq.s32.totalorder %s15, 0
    %p57 = por %p55, %p56
    %p58 = scmp.ne.s32.totalorder %s46, %s47
    %p59 = scmp.eq.s32.totalorder %s16, 1
    %p60 = por %p58, %p59
    %p62 = scmp.ne.s32.totalorder %s47, %s61
    %p63 = scmp.eq.s32.totalorder %s16, 0
    %p64 = por %p62, %p63
    %s65 = ssub.s32 %s10, %s17
    %p66 = scmp.eq.s32.totalorder %s65, 0
    %s68 = sadd.s32 %s67, 1
    %s69 = scalar_select %p66, %s67, %s68
    %p72 = pneg %p66
    %p73 = scmp.eq.s32.totalorder %s10, 1
    %p74 = por %p72, %p73
    %p75 = scmp.ne.s32.totalorder %s67, %s70
    %p76 = scmp.eq.s32.totalorder %s10, 0
    %p77 = por %p75, %p76
    %p78 = scmp.ne.s32.totalorder %s67, %s70
    %p79 = scmp.eq.s32.totalorder %s15, 1
    %p80 = por %p78, %p79
    %p81 = scmp.ne.s32.totalorder %s70, %s71
    %p82 = scmp.eq.s32.totalorder %s15, 0
    %p83 = por %p81, %p82
    %p84 = scmp.ne.s32.totalorder %s70, %s71
    %p85 = scmp.eq.s32.totalorder %s16, 1
    %p86 = por %p84, %p85
    %p88 = scmp.ne.s32.totalorder %s71, %s87
    %p89 = scmp.eq.s32.totalorder %s16, 0
    %p90 = por %p88, %p89
    %s91 = ssub.s32 %s10, %s17
    %p92 = scmp.eq.s32.totalorder %s91, 0
    %s94 = sadd.s32 %s93, 1
    %s95 = scalar_select %p92, %s93, %s94
    %p98 = pneg %p92
    %p99 = scmp.eq.s32.totalorder %s10, 1
    %p100 = por %p98, %p99
    %p101 = scmp.ne.s32.totalorder %s93, %s96
    %p102 = scmp.eq.s32.totalorder %s10, 0
    %p103 = por %p101, %p102
    %p104 = scmp.ne.s32.totalorder %s93, %s96
    %p105 = scmp.eq.s32.totalorder %s15, 1
    %p106 = por %p104, %p105
    %p107 = scmp.ne.s32.totalorder %s96, %s97
    %p108 = scmp.eq.s32.totalorder %s15, 0
    %p109 = por %p107, %p108
    %p110 = scmp.ne.s32.totalorder %s96, %s97
    %p111 = scmp.eq.s32.totalorder %s16, 1
    %p112 = por %p110, %p111
    %p114 = scmp.ne.s32.totalorder %s97, %s113
    %p115 = scmp.eq.s32.totalorder %s16, 0
    %p116 = por %p114, %p115
    %p117 = scmp.le.s32.totalorder 1, %s10
    %p118 = scmp.lt.s32.totalorder %s10, 3
    %p119 = pnand %p117, %p118
    %p120 = pneg %p119
    // Predicated region
    $region9: #{convnet_forward.2} parent=5 // pred_check
      _
    $region10: #{convnet_forward.2} parent=5 // pred_check_branch
      %122 = sbr.rel (%p119) target = $region12
    $region11: #{convnet_forward.2} parent=5 // pred_region
      %s123 = ssub.s32 %s10, 1
      // Predicated region
      $region13: #{convnet_forward.2} parent=11 // pred_check
        %p124 = pneg %p57
      $region14: #{convnet_forward.2} parent=11 // pred_check_branch
        %126 = sbr.rel (%p124) target = $region16
      $region15: #{convnet_forward.2} parent=11 // pred_region
        _
      $region16: #{convnet_forward.2} parent=11 // pred_fallthru
        _
    $region12: #{convnet_forward.2} parent=5 // pred_fallthru
      _
    %p127 = scmp.lt.s32.totalorder %s10, 2
    // Predicated region
    $region17: #{convnet_forward.2} parent=5 // pred_check
      %p128 = pneg %p127
    $region18: #{convnet_forward.2} parent=5 // pred_check_branch
      %130 = sbr.rel (%p128) target = $region20
    $region19: #{convnet_forward.2} parent=5 // pred_region
      // Predicated region
      $region21: #{convnet_forward.2} parent=19 // pred_check
        %p131 = pneg %p30
      $region22: #{convnet_forward.2} parent=19 // pred_check_branch
        %133 = sbr.rel (%p131) target = $region24
      $region23: #{convnet_forward.2} parent=19 // pred_region
        %s134 = smul.u32 32, %s10
        %p135 = scmp.lt.s32.totalorder %s134, 63
        %s136 = scalar_select %p135, %s134, 63
        %s137 = smul.addr %s136, 8
        %s138 = scalar_lea.vmem %s0, %s137
        %s139 = smul.u32 32, %s10
      $region24: #{convnet_forward.2} parent=19 // pred_fallthru
        _
    $region20: #{convnet_forward.2} parent=5 // pred_fallthru
      _
    %p140 = scmp.le.s32.totalorder 1, %s10
    %p141 = scmp.lt.s32.totalorder %s10, 3
    %p142 = pnand %p140, %p141
    %p143 = pneg %p142
    // Predicated region
    $region25: #{convnet_forward.2} parent=5 // pred_check
      _
    $region26: #{convnet_forward.2} parent=5 // pred_check_branch
      %145 = sbr.rel (%p142) target = $region28
    $region27: #{convnet_forward.2} parent=5 // pred_region
      %s146 = ssub.s32 %s10, 1
      %s147 = smul.u32 32, %s15
      %p148 = scmp.lt.s32.totalorder %s147, 63
      %s149 = scalar_select %p148, %s147, 63
      %s150 = smul.addr %s149, 8
      %s151 = scalar_lea.vmem %s0, %s150
      %p152 = pneg %p36
      %p153 = pneg %p33
      %p154 = pneg %p57
      %p155 = pneg %p54
      %p156 = pneg %p83
      %p157 = pneg %p80
      %s158 = smul.u32 32, %s15
      %p159 = scmp.lt.s32.totalorder %s158, 63
      %s160 = scalar_select %p159, %s158, 63
      %s161 = smul.addr %s160, 8
      %s162 = scalar_lea.vmem %s2, %s161
      %p163 = pneg %p109
      %p164 = pneg %p106
      %p165 = scmp.lt.s32.totalorder %s15, 1
      %s166 = scalar_select %p165, %s15, 1
      %s167 = smul.addr %s166, 2
      %s168 = scalar_lea.vmem %s3, %s167
      %s169 = smul.u32 32, %s15
      %p170 = scmp.lt.s32.totalorder %s169, 63
      %s171 = scalar_select %p170, %s169, 63
      %s172 = smul.addr %s171, 8
      %s173 = scalar_lea.vmem %s0, %s172
      %s174 = smul.u32 32, %s15
      %s175 = smul.u32 32, %s15
      %p176 = scmp.lt.s32.totalorder %s175, 63
      %s177 = scalar_select %p176, %s175, 63
      %s178 = smul.addr %s177, 8
      %s179 = scalar_lea.vmem %s2, %s178
      %s180 = smul.u32 32, %s15
      %p181 = scmp.lt.s32.totalorder %s15, 1
      %s182 = scalar_select %p181, %s15, 1
      %s183 = smul.addr %s182, 2
      %s184 = scalar_lea.vmem %s3, %s183
      %v185 = vld [vmem:[%s173] sm:$0xff]
      %v186 = vld [vmem:[%s173 + $0x8] sm:$0xff]
      %v187 = vld [vmem:[%s173 + $0x10] sm:$0xff]
      %v188 = vld [vmem:[%s173 + $0x18] sm:$0xff]
      %v189 = vld [vmem:[%s173 + $0x20] sm:$0xff]
      %v190 = vld [vmem:[%s173 + $0x28] sm:$0xff]
      %v191 = vld [vmem:[%s173 + $0x30] sm:$0xff]
      %v192 = vld [vmem:[%s173 + $0x38] sm:$0xff]
      %v193 = vld [vmem:[%s173 + $0x40] sm:$0xff]
      %v194 = vld [vmem:[%s173 + $0x48] sm:$0xff]
      %v195 = vld [vmem:[%s173 + $0x50] sm:$0xff]
      %v196 = vld [vmem:[%s173 + $0x58] sm:$0xff]
      %v197 = vld [vmem:[%s173 + $0x60] sm:$0xff]
      %v198 = vld [vmem:[%s173 + $0x68] sm:$0xff]
      %v199 = vld [vmem:[%s173 + $0x70] sm:$0xff]
      %v200 = vld [vmem:[%s173 + $0x78] sm:$0xff]
      %v201 = vld [vmem:[%s173 + $0x80] sm:$0xff]
      %v202 = vld [vmem:[%s173 + $0x88] sm:$0xff]
      %v203 = vld [vmem:[%s173 + $0x90] sm:$0xff]
      %v204 = vld [vmem:[%s173 + $0x98] sm:$0xff]
      %v205 = vld [vmem:[%s173 + $0xa0] sm:$0xff]
      %v206 = vld [vmem:[%s173 + $0xa8] sm:$0xff]
      %v207 = vld [vmem:[%s173 + $0xb0] sm:$0xff]
      %v208 = vld [vmem:[%s173 + $0xb8] sm:$0xff]
      %v209 = vld [vmem:[%s173 + $0xc0] sm:$0xff]
      %v210 = vld [vmem:[%s173 + $0xc8] sm:$0xff]
      %v211 = vld [vmem:[%s173 + $0xd0] sm:$0xff]
      %v212 = vld [vmem:[%s173 + $0xd8] sm:$0xff]
      %v213 = vld [vmem:[%s173 + $0xe0] sm:$0xff]
      %v214 = vld [vmem:[%s173 + $0xe8] sm:$0xff]
      %v215 = vld [vmem:[%s173 + $0xf0] sm:$0xff]
      %v216 = vld [vmem:[%s173 + $0xf8] sm:$0xff]
      %v217 = vld [vmem:[%s1] sm:$0xff]
      %v218 = vld [vmem:[%s1 + $0x8] sm:$0xff]
      %v219 = vld [vmem:[%s1 + $0x10] sm:$0xff]
      %v220 = vld [vmem:[%s1 + $0x18] sm:$0xff]
      %v221 = vld [vmem:[%s1 + $0x20] sm:$0xf]
      %vm222 = vcmask 293888
      %v224 = vsel %vm222, %v185, 0
      %v227 = vsel %vm222, %v186, 0
      %v230 = vsel %vm222, %v187, 0
      %v233 = vsel %vm222, %v188, 0
      %v236 = vsel %vm222, %v189, 0
      %v239 = vsel %vm222, %v190, 0
      %v242 = vsel %vm222, %v191, 0
      %v245 = vsel %vm222, %v192, 0
      %v248 = vsel %vm222, %v193, 0
      %v251 = vsel %vm222, %v194, 0
      %v254 = vsel %vm222, %v195, 0
      %v257 = vsel %vm222, %v196, 0
      %v260 = vsel %vm222, %v197, 0
      %v263 = vsel %vm222, %v198, 0
      %v266 = vsel %vm222, %v199, 0
      %v269 = vsel %vm222, %v200, 0
      %v272 = vsel %vm222, %v201, 0
      %v275 = vsel %vm222, %v202, 0
      %v278 = vsel %vm222, %v203, 0
      %v281 = vsel %vm222, %v204, 0
      %v284 = vsel %vm222, %v205, 0
      %v287 = vsel %vm222, %v206, 0
      %v290 = vsel %vm222, %v207, 0
      %v293 = vsel %vm222, %v208, 0
      %v296 = vsel %vm222, %v209, 0
      %v299 = vsel %vm222, %v210, 0
      %v302 = vsel %vm222, %v211, 0
      %v305 = vsel %vm222, %v212, 0
      %v308 = vsel %vm222, %v213, 0
      %v311 = vsel %vm222, %v214, 0
      %v314 = vsel %vm222, %v215, 0
      %v317 = vsel %vm222, %v216, 0
      %vm319 = vcmask 1043456
      %v321 = vsel %vm319, %v221, 0
      %323 = vmatprep.subr.mxu0 0.0
      %324 = vmatpush1.msra.mxu0 0.0
      %325 = vmatprep.subr.mxu0 0.0
      %326 = vmatpush1.msra.mxu0 0.0
      %327 = vmatprep.subr.mxu0 0.0
      %328 = vmatpush1.msra.mxu0 0.0
      %329 = vmatprep.subr.mxu0 0.0
      %330 = vmatpush1.msra.mxu0 0.0
      %331 = vmatprep.subr.mxu0 0.0
      %332 = vmatpush1.msra.mxu0 0.0
      %333 = vmatprep.subr.mxu0 0.0
      %334 = vmatpush1.msra.mxu0 0.0
      %335 = vmatprep.subr.mxu0 0.0
      %336 = vmatpush1.msra.mxu0 0.0
      %337 = vmatprep.subr.mxu0 0.0
      %338 = vmatpush1.msra.mxu0 0.0
      %339 = vmatprep.subr.mxu0 0.0
      %340 = vmatpush1.msra.mxu0 0.0
      %341 = vmatprep.subr.mxu0 0.0
      %342 = vmatpush1.msra.mxu0 0.0
      %343 = vmatprep.subr.mxu0 0.0
      %344 = vmatpush1.msra.mxu0 0.0
      %345 = vmatprep.subr.mxu0 0.0
      %346 = vmatpush1.msra.mxu0 %v321
      %347 = vmatprep.subr.mxu0 0.0
      %348 = vmatpush1.msra.mxu0 %v220
      %349 = vmatprep.subr.mxu0 0.0
      %350 = vmatpush1.msra.mxu0 %v219
      %351 = vmatprep.subr.mxu0 0.0
      %352 = vmatpush1.msra.mxu0 %v218
      %353 = vmatprep.subr.mxu0 0.0
      %354 = vmatpush1.msra.mxu0 %v217
      %355 = vmatprep.subr.mxu0 0.0
      %356 = vmatpush2.msra.mxu0 0.0
      %357 = vmatprep.subr.mxu0 0.0
      %358 = vmatpush2.msra.mxu0 0.0
      %359 = vmatprep.subr.mxu0 0.0
      %360 = vmatpush2.msra.mxu0 0.0
      %361 = vmatprep.subr.mxu0 0.0
      %362 = vmatpush2.msra.mxu0 0.0
      %363 = vmatprep.subr.mxu0 0.0
      %364 = vmatpush2.msra.mxu0 0.0
      %365 = vmatprep.subr.mxu0 0.0
      %366 = vmatpush2.msra.mxu0 0.0
      %367 = vmatprep.subr.mxu0 0.0
      %368 = vmatpush2.msra.mxu0 0.0
      %369 = vmatprep.subr.mxu0 0.0
      %370 = vmatpush2.msra.mxu0 0.0
      %371 = vmatprep.subr.mxu0 0.0
      %372 = vmatpush2.msra.mxu0 0.0
      %373 = vmatprep.subr.mxu0 0.0
      %374 = vmatpush2.msra.mxu0 0.0
      %375 = vmatprep.subr.mxu0 0.0
      %376 = vmatpush2.msra.mxu0 0.0
      %377 = vmatprep.subr.mxu0 0.0
      %378 = vmatpush2.msra.mxu0 0.0
      %379 = vmatprep.subr.mxu0 0.0
      %380 = vmatpush2.msra.mxu0 0.0
      %381 = vmatprep.subr.mxu0 0.0
      %382 = vmatpush2.msra.mxu0 0.0
      %383 = vmatprep.subr.mxu0 0.0
      %384 = vmatpush2.msra.mxu0 0.0
      %385 = vmatprep.subr.mxu0 0.0
      %386 = vmatpush2.msra.mxu0 0.0
      %387 = vmatprep.mubr.f32.mxu0 0.0
      %388 = vmatmul.mubr.f32.gmra.mxu0 %v224
      %v389 = vpop.f32.mrf.mxu0
      %v390 = vadd.f32 0.0, %v389
      %v391 = vpop.f32.mrf.mxu0
      %392 = vmatprep.mubr.f32.mxu0 0.0
      %393 = vmatmul.mubr.f32.gmra.mxu0 %v227
      %v394 = vpop.f32.mrf.mxu0
      %v395 = vadd.f32 0.0, %v394
      %v396 = vpop.f32.mrf.mxu0
      %397 = vmatprep.mubr.f32.mxu0 0.0
      %398 = vmatmul.mubr.f32.gmra.mxu0 %v230
      %v399 = vpop.f32.mrf.mxu0
      %v400 = vadd.f32 0.0, %v399
      %v401 = vpop.f32.mrf.mxu0
      %402 = vmatprep.mubr.f32.mxu0 0.0
      %403 = vmatmul.mubr.f32.gmra.mxu0 %v233
      %v404 = vpop.f32.mrf.mxu0
      %v405 = vadd.f32 0.0, %v404
      %v406 = vpop.f32.mrf.mxu0
      %407 = vmatprep.mubr.f32.mxu0 0.0
      %408 = vmatmul.mubr.f32.gmra.mxu0 %v236
      %v409 = vpop.f32.mrf.mxu0
      %v410 = vadd.f32 0.0, %v409
      %v411 = vpop.f32.mrf.mxu0
      %412 = vmatprep.mubr.f32.mxu0 0.0
      %413 = vmatmul.mubr.f32.gmra.mxu0 %v239
      %v414 = vpop.f32.mrf.mxu0
      %v415 = vadd.f32 0.0, %v414
      %v416 = vpop.f32.mrf.mxu0
      %417 = vmatprep.mubr.f32.mxu0 0.0
      %418 = vmatmul.mubr.f32.gmra.mxu0 %v242
      %v419 = vpop.f32.mrf.mxu0
      %v420 = vadd.f32 0.0, %v419
      %v421 = vpop.f32.mrf.mxu0
      %422 = vmatprep.mubr.f32.mxu0 0.0
      %423 = vmatmul.mubr.f32.gmra.mxu0 %v245
      %v424 = vpop.f32.mrf.mxu0
      %v425 = vadd.f32 0.0, %v424
      %v426 = vpop.f32.mrf.mxu0
      %427 = vmatprep.mubr.f32.mxu0 0.0
      %428 = vmatmul.mubr.f32.gmra.mxu0 %v248
      %v429 = vpop.f32.mrf.mxu0
      %v430 = vadd.f32 0.0, %v429
      %v431 = vpop.f32.mrf.mxu0
      %432 = vmatprep.mubr.f32.mxu0 0.0
      %433 = vmatmul.mubr.f32.gmra.mxu0 %v251
      %v434 = vpop.f32.mrf.mxu0
      %v435 = vadd.f32 0.0, %v434
      %v436 = vpop.f32.mrf.mxu0
      %437 = vmatprep.mubr.f32.mxu0 0.0
      %438 = vmatmul.mubr.f32.gmra.mxu0 %v254
      %v439 = vpop.f32.mrf.mxu0
      %v440 = vadd.f32 0.0, %v439
      %v441 = vpop.f32.mrf.mxu0
      %442 = vmatprep.mubr.f32.mxu0 0.0
      %443 = vmatmul.mubr.f32.gmra.mxu0 %v257
      %v444 = vpop.f32.mrf.mxu0
      %v445 = vadd.f32 0.0, %v444
      %v446 = vpop.f32.mrf.mxu0
      %447 = vmatprep.mubr.f32.mxu0 0.0
      %448 = vmatmul.mubr.f32.gmra.mxu0 %v260
      %v449 = vpop.f32.mrf.mxu0
      %v450 = vadd.f32 0.0, %v449
      %v451 = vpop.f32.mrf.mxu0
      %452 = vmatprep.mubr.f32.mxu0 0.0
      %453 = vmatmul.mubr.f32.gmra.mxu0 %v263
      %v454 = vpop.f32.mrf.mxu0
      %v455 = vadd.f32 0.0, %v454
      %v456 = vpop.f32.mrf.mxu0
      %457 = vmatprep.mubr.f32.mxu0 0.0
      %458 = vmatmul.mubr.f32.gmra.mxu0 %v266
      %v459 = vpop.f32.mrf.mxu0
      %v460 = vadd.f32 0.0, %v459
      %v461 = vpop.f32.mrf.mxu0
      %462 = vmatprep.mubr.f32.mxu0 0.0
      %463 = vmatmul.mubr.f32.gmra.mxu0 %v269
      %v464 = vpop.f32.mrf.mxu0
      %v465 = vadd.f32 0.0, %v464
      %v466 = vpop.f32.mrf.mxu0
      %467 = vmatprep.mubr.f32.mxu0 0.0
      %468 = vmatmul.mubr.f32.gmra.mxu0 %v272
      %v469 = vpop.f32.mrf.mxu0
      %v470 = vadd.f32 0.0, %v469
      %v471 = vpop.f32.mrf.mxu0
      %472 = vmatprep.mubr.f32.mxu0 0.0
      %473 = vmatmul.mubr.f32.gmra.mxu0 %v275
      %v474 = vpop.f32.mrf.mxu0
      %v475 = vadd.f32 0.0, %v474
      %v476 = vpop.f32.mrf.mxu0
      %477 = vmatprep.mubr.f32.mxu0 0.0
      %478 = vmatmul.mubr.f32.gmra.mxu0 %v278
      %v479 = vpop.f32.mrf.mxu0
      %v480 = vadd.f32 0.0, %v479
      %v481 = vpop.f32.mrf.mxu0
      %482 = vmatprep.mubr.f32.mxu0 0.0
      %483 = vmatmul.mubr.f32.gmra.mxu0 %v281
      %v484 = vpop.f32.mrf.mxu0
      %v485 = vadd.f32 0.0, %v484
      %v486 = vpop.f32.mrf.mxu0
      %487 = vmatprep.mubr.f32.mxu0 0.0
      %488 = vmatmul.mubr.f32.gmra.mxu0 %v284
      %v489 = vpop.f32.mrf.mxu0
      %v490 = vadd.f32 0.0, %v489
      %v491 = vpop.f32.mrf.mxu0
      %492 = vmatprep.mubr.f32.mxu0 0.0
      %493 = vmatmul.mubr.f32.gmra.mxu0 %v287
      %v494 = vpop.f32.mrf.mxu0
      %v495 = vadd.f32 0.0, %v494
      %v496 = vpop.f32.mrf.mxu0
      %497 = vmatprep.mubr.f32.mxu0 0.0
      %498 = vmatmul.mubr.f32.gmra.mxu0 %v290
      %v499 = vpop.f32.mrf.mxu0
      %v500 = vadd.f32 0.0, %v499
      %v501 = vpop.f32.mrf.mxu0
      %502 = vmatprep.mubr.f32.mxu0 0.0
      %503 = vmatmul.mubr.f32.gmra.mxu0 %v293
      %v504 = vpop.f32.mrf.mxu0
      %v505 = vadd.f32 0.0, %v504
      %v506 = vpop.f32.mrf.mxu0
      %507 = vmatprep.mubr.f32.mxu0 0.0
      %508 = vmatmul.mubr.f32.gmra.mxu0 %v296
      %v509 = vpop.f32.mrf.mxu0
      %v510 = vadd.f32 0.0, %v509
      %v511 = vpop.f32.mrf.mxu0
      %512 = vmatprep.mubr.f32.mxu0 0.0
      %513 = vmatmul.mubr.f32.gmra.mxu0 %v299
      %v514 = vpop.f32.mrf.mxu0
      %v515 = vadd.f32 0.0, %v514
      %v516 = vpop.f32.mrf.mxu0
      %517 = vmatprep.mubr.f32.mxu0 0.0
      %518 = vmatmul.mubr.f32.gmra.mxu0 %v302
      %v519 = vpop.f32.mrf.mxu0
      %v520 = vadd.f32 0.0, %v519
      %v521 = vpop.f32.mrf.mxu0
      %522 = vmatprep.mubr.f32.mxu0 0.0
      %523 = vmatmul.mubr.f32.gmra.mxu0 %v305
      %v524 = vpop.f32.mrf.mxu0
      %v525 = vadd.f32 0.0, %v524
      %v526 = vpop.f32.mrf.mxu0
      %527 = vmatprep.mubr.f32.mxu0 0.0
      %528 = vmatmul.mubr.f32.gmra.mxu0 %v308
      %v529 = vpop.f32.mrf.mxu0
      %v530 = vadd.f32 0.0, %v529
      %v531 = vpop.f32.mrf.mxu0
      %532 = vmatprep.mubr.f32.mxu0 0.0
      %533 = vmatmul.mubr.f32.gmra.mxu0 %v311
      %v534 = vpop.f32.mrf.mxu0
      %v535 = vadd.f32 0.0, %v534
      %v536 = vpop.f32.mrf.mxu0
      %537 = vmatprep.mubr.f32.mxu0 0.0
      %538 = vmatmul.mubr.f32.gmra.mxu0 %v314
      %v539 = vpop.f32.mrf.mxu0
      %v540 = vadd.f32 0.0, %v539
      %v541 = vpop.f32.mrf.mxu0
      %542 = vmatprep.mubr.f32.mxu0 0.0
      %543 = vmatmul.mubr.f32.gmra.mxu0 %v317
      %v544 = vpop.f32.mrf.mxu0
      %v545 = vadd.f32 0.0, %v544
      %v546 = vpop.f32.mrf.mxu0
      %547 = vdwg.mxu0
      %vm548 = vcmask 64512
      %549 = vst.msk [vmem:[%s179] sm:$0xff] %vm548, %v390
      %550 = vst.msk [vmem:[%s179 + $0x8] sm:$0xff] %vm548, %v395
      %551 = vst.msk [vmem:[%s179 + $0x10] sm:$0xff] %vm548, %v400
      %552 = vst.msk [vmem:[%s179 + $0x18] sm:$0xff] %vm548, %v405
      %553 = vst.msk [vmem:[%s179 + $0x20] sm:$0xff] %vm548, %v410
      %554 = vst.msk [vmem:[%s179 + $0x28] sm:$0xff] %vm548, %v415
      %555 = vst.msk [vmem:[%s179 + $0x30] sm:$0xff] %vm548, %v420
      %556 = vst.msk [vmem:[%s179 + $0x38] sm:$0xff] %vm548, %v425
      %557 = vst.msk [vmem:[%s179 + $0x40] sm:$0xff] %vm548, %v430
      %558 = vst.msk [vmem:[%s179 + $0x48] sm:$0xff] %vm548, %v435
      %559 = vst.msk [vmem:[%s179 + $0x50] sm:$0xff] %vm548, %v440
      %560 = vst.msk [vmem:[%s179 + $0x58] sm:$0xff] %vm548, %v445
      %561 = vst.msk [vmem:[%s179 + $0x60] sm:$0xff] %vm548, %v450
      %562 = vst.msk [vmem:[%s179 + $0x68] sm:$0xff] %vm548, %v455
      %563 = vst.msk [vmem:[%s179 + $0x70] sm:$0xff] %vm548, %v460
      %564 = vst.msk [vmem:[%s179 + $0x78] sm:$0xff] %vm548, %v465
      %565 = vst.msk [vmem:[%s179 + $0x80] sm:$0xff] %vm548, %v470
      %566 = vst.msk [vmem:[%s179 + $0x88] sm:$0xff] %vm548, %v475
      %567 = vst.msk [vmem:[%s179 + $0x90] sm:$0xff] %vm548, %v480
      %568 = vst.msk [vmem:[%s179 + $0x98] sm:$0xff] %vm548, %v485
      %569 = vst.msk [vmem:[%s179 + $0xa0] sm:$0xff] %vm548, %v490
      %570 = vst.msk [vmem:[%s179 + $0xa8] sm:$0xff] %vm548, %v495
      %571 = vst.msk [vmem:[%s179 + $0xb0] sm:$0xff] %vm548, %v500
      %572 = vst.msk [vmem:[%s179 + $0xb8] sm:$0xff] %vm548, %v505
      %573 = vst.msk [vmem:[%s179 + $0xc0] sm:$0xff] %vm548, %v510
      %574 = vst.msk [vmem:[%s179 + $0xc8] sm:$0xff] %vm548, %v515
      %575 = vst.msk [vmem:[%s179 + $0xd0] sm:$0xff] %vm548, %v520
      %576 = vst.msk [vmem:[%s179 + $0xd8] sm:$0xff] %vm548, %v525
      %577 = vst.msk [vmem:[%s179 + $0xe0] sm:$0xff] %vm548, %v530
      %578 = vst.msk [vmem:[%s179 + $0xe8] sm:$0xff] %vm548, %v535
      %579 = vst.msk [vmem:[%s179 + $0xf0] sm:$0xff] %vm548, %v540
      %580 = vst.msk [vmem:[%s179 + $0xf8] sm:$0xff] %vm548, %v545
      %v581 = vsel %vm548, %v390, 0.0
      %v582 = vsel %vm548, %v395, 0.0
      %v583 = vadd.f32 %v581, %v582
      %v584 = vsel %vm548, %v400, 0.0
      %v585 = vadd.f32 %v583, %v584
      %v586 = vsel %vm548, %v405, 0.0
      %v587 = vadd.f32 %v585, %v586
      %v588 = vsel %vm548, %v410, 0.0
      %v589 = vadd.f32 %v587, %v588
      %v590 = vsel %vm548, %v415, 0.0
      %v591 = vadd.f32 %v589, %v590
      %v592 = vsel %vm548, %v420, 0.0
      %v593 = vadd.f32 %v591, %v592
      %v594 = vsel %vm548, %v425, 0.0
      %v595 = vadd.f32 %v593, %v594
      %v596 = vsel %vm548, %v430, 0.0
      %v597 = vadd.f32 %v595, %v596
      %v598 = vsel %vm548, %v435, 0.0
      %v599 = vadd.f32 %v597, %v598
      %v600 = vsel %vm548, %v440, 0.0
      %v601 = vadd.f32 %v599, %v600
      %v602 = vsel %vm548, %v445, 0.0
      %v603 = vadd.f32 %v601, %v602
      %v604 = vsel %vm548, %v450, 0.0
      %v605 = vadd.f32 %v603, %v604
      %v606 = vsel %vm548, %v455, 0.0
      %v607 = vadd.f32 %v605, %v606
      %v608 = vsel %vm548, %v460, 0.0
      %v609 = vadd.f32 %v607, %v608
      %v610 = vsel %vm548, %v465, 0.0
      %v611 = vadd.f32 %v609, %v610
      %v612 = vsel %vm548, %v470, 0.0
      %v613 = vadd.f32 %v611, %v612
      %v614 = vsel %vm548, %v475, 0.0
      %v615 = vadd.f32 %v613, %v614
      %v616 = vsel %vm548, %v480, 0.0
      %v617 = vadd.f32 %v615, %v616
      %v618 = vsel %vm548, %v485, 0.0
      %v619 = vadd.f32 %v617, %v618
      %v620 = vsel %vm548, %v490, 0.0
      %v621 = vadd.f32 %v619, %v620
      %v622 = vsel %vm548, %v495, 0.0
      %v623 = vadd.f32 %v621, %v622
      %v624 = vsel %vm548, %v500, 0.0
      %v625 = vadd.f32 %v623, %v624
      %v626 = vsel %vm548, %v505, 0.0
      %v627 = vadd.f32 %v625, %v626
      %v628 = vsel %vm548, %v510, 0.0
      %v629 = vadd.f32 %v627, %v628
      %v630 = vsel %vm548, %v515, 0.0
      %v631 = vadd.f32 %v629, %v630
      %v632 = vsel %vm548, %v520, 0.0
      %v633 = vadd.f32 %v631, %v632
      %v634 = vsel %vm548, %v525, 0.0
      %v635 = vadd.f32 %v633, %v634
      %v636 = vsel %vm548, %v530, 0.0
      %v637 = vadd.f32 %v635, %v636
      %v638 = vsel %vm548, %v535, 0.0
      %v639 = vadd.f32 %v637, %v638
      %v640 = vsel %vm548, %v540, 0.0
      %v641 = vadd.f32 %v639, %v640
      %v642 = vsel %vm548, %v545, 0.0
      %v643 = vadd.f32 %v641, %v642
      %v644 = vrot.slane %v643, 4
      %v645 = vadd.f32 %v643, %v644
      %v646 = vrot.slane %v645, 2
      %v647 = vadd.f32 %v645, %v646
      %v648 = vrot.slane %v647, 1
      %v649 = vadd.f32 %v647, %v648
      %v650 = vmul.f32 %v390, %v390
      %v651 = vmul.f32 %v395, %v395
      %v652 = vmul.f32 %v400, %v400
      %v653 = vmul.f32 %v405, %v405
      %v654 = vmul.f32 %v410, %v410
      %v655 = vmul.f32 %v415, %v415
      %v656 = vmul.f32 %v420, %v420
      %v657 = vmul.f32 %v425, %v425
      %v658 = vmul.f32 %v430, %v430
      %v659 = vmul.f32 %v435, %v435
      %v660 = vmul.f32 %v440, %v440
      %v661 = vmul.f32 %v445, %v445
      %v662 = vmul.f32 %v450, %v450
      %v663 = vmul.f32 %v455, %v455
      %v664 = vmul.f32 %v460, %v460
      %v665 = vmul.f32 %v465, %v465
      %v666 = vmul.f32 %v470, %v470
      %v667 = vmul.f32 %v475, %v475
      %v668 = vmul.f32 %v480, %v480
      %v669 = vmul.f32 %v485, %v485
      %v670 = vmul.f32 %v490, %v490
      %v671 = vmul.f32 %v495, %v495
      %v672 = vmul.f32 %v500, %v500
      %v673 = vmul.f32 %v505, %v505
      %v674 = vmul.f32 %v510, %v510
      %v675 = vmul.f32 %v515, %v515
      %v676 = vmul.f32 %v520, %v520
      %v677 = vmul.f32 %v525, %v525
      %v678 = vmul.f32 %v530, %v530
      %v679 = vmul.f32 %v535, %v535
      %v680 = vmul.f32 %v540, %v540
      %v681 = vmul.f32 %v545, %v545
      %v682 = vsel %vm548, %v650, 0.0
      %v683 = vsel %vm548, %v651, 0.0
      %v684 = vadd.f32 %v682, %v683
      %v685 = vsel %vm548, %v652, 0.0
      %v686 = vadd.f32 %v684, %v685
      %v687 = vsel %vm548, %v653, 0.0
      %v688 = vadd.f32 %v686, %v687
      %v689 = vsel %vm548, %v654, 0.0
      %v690 = vadd.f32 %v688, %v689
      %v691 = vsel %vm548, %v655, 0.0
      %v692 = vadd.f32 %v690, %v691
      %v693 = vsel %vm548, %v656, 0.0
      %v694 = vadd.f32 %v692, %v693
      %v695 = vsel %vm548, %v657, 0.0
      %v696 = vadd.f32 %v694, %v695
      %v697 = vsel %vm548, %v658, 0.0
      %v698 = vadd.f32 %v696, %v697
      %v699 = vsel %vm548, %v659, 0.0
      %v700 = vadd.f32 %v698, %v699
      %v701 = vsel %vm548, %v660, 0.0
      %v702 = vadd.f32 %v700, %v701
      %v703 = vsel %vm548, %v661, 0.0
      %v704 = vadd.f32 %v702, %v703
      %v705 = vsel %vm548, %v662, 0.0
      %v706 = vadd.f32 %v704, %v705
      %v707 = vsel %vm548, %v663, 0.0
      %v708 = vadd.f32 %v706, %v707
      %v709 = vsel %vm548, %v664, 0.0
      %v710 = vadd.f32 %v708, %v709
      %v711 = vsel %vm548, %v665, 0.0
      %v712 = vadd.f32 %v710, %v711
      %v713 = vsel %vm548, %v666, 0.0
      %v714 = vadd.f32 %v712, %v713
      %v715 = vsel %vm548, %v667, 0.0
      %v716 = vadd.f32 %v714, %v715
      %v717 = vsel %vm548, %v668, 0.0
      %v718 = vadd.f32 %v716, %v717
      %v719 = vsel %vm548, %v669, 0.0
      %v720 = vadd.f32 %v718, %v719
      %v721 = vsel %vm548, %v670, 0.0
      %v722 = vadd.f32 %v720, %v721
      %v723 = vsel %vm548, %v671, 0.0
      %v724 = vadd.f32 %v722, %v723
      %v725 = vsel %vm548, %v672, 0.0
      %v726 = vadd.f32 %v724, %v725
      %v727 = vsel %vm548, %v673, 0.0
      %v728 = vadd.f32 %v726, %v727
      %v729 = vsel %vm548, %v674, 0.0
      %v730 = vadd.f32 %v728, %v729
      %v731 = vsel %vm548, %v675, 0.0
      %v732 = vadd.f32 %v730, %v731
      %v733 = vsel %vm548, %v676, 0.0
      %v734 = vadd.f32 %v732, %v733
      %v735 = vsel %vm548, %v677, 0.0
      %v736 = vadd.f32 %v734, %v735
      %v737 = vsel %vm548, %v678, 0.0
      %v738 = vadd.f32 %v736, %v737
      %v739 = vsel %vm548, %v679, 0.0
      %v740 = vadd.f32 %v738, %v739
      %v741 = vsel %vm548, %v680, 0.0
      %v742 = vadd.f32 %v740, %v741
      %v743 = vsel %vm548, %v681, 0.0
      %v744 = vadd.f32 %v742, %v743
      %v745 = vrot.slane %v744, 4
      %v746 = vadd.f32 %v744, %v745
      %v747 = vrot.slane %v746, 2
      %v748 = vadd.f32 %v746, %v747
      %v749 = vrot.slane %v748, 1
      %v750 = vadd.f32 %v748, %v749
      %vm751 = vcmask 1040384
      %v752 = vsel %vm751, %v649, %v750
      %vm753 = vcmask 58368
      %754 = vst.msk [vmem:[%s184] sm:$0x3] %vm753, %v752
      %s755 = smul.u32 32, %s15
      %p756 = scmp.lt.s32.totalorder %s755, 63
      %s757 = scalar_select %p756, %s755, 63
      %s758 = smul.addr %s757, 8
      %s759 = scalar_lea.vmem %s2, %s758
      %p760 = scmp.lt.s32.totalorder %s15, 1
      %s761 = scalar_select %p760, %s15, 1
      %s762 = smul.addr %s761, 2
      %s763 = scalar_lea.vmem %s3, %s762
      // Predicated region
      $region29: #{convnet_forward.2} parent=27 // pred_check
        %p764 = pneg %p80
      $region30: #{convnet_forward.2} parent=27 // pred_check_branch
        %766 = sbr.rel (%p764) target = $region32
      $region31: #{convnet_forward.2} parent=27 // pred_region
        %s767 = smul.u32 32, %s15
      $region32: #{convnet_forward.2} parent=27 // pred_fallthru
        _
      // Predicated region
      $region33: #{convnet_forward.2} parent=27 // pred_check
        %p768 = pneg %p106
      $region34: #{convnet_forward.2} parent=27 // pred_check_branch
        %770 = sbr.rel (%p768) target = $region36
      $region35: #{convnet_forward.2} parent=27 // pred_region
        _
      $region36: #{convnet_forward.2} parent=27 // pred_fallthru
        _
    $region28: #{convnet_forward.2} parent=5 // pred_fallthru
      _
    %p771 = scmp.le.s32.totalorder 2, %s10
    // Predicated region
    $region37: #{convnet_forward.2} parent=5 // pred_check
      %p772 = pneg %p771
    $region38: #{convnet_forward.2} parent=5 // pred_check_branch
      %774 = sbr.rel (%p772) target = $region40
    $region39: #{convnet_forward.2} parent=5 // pred_region
      %s775 = ssub.s32 %s10, 2
      // Predicated region
      $region41: #{convnet_forward.2} parent=39 // pred_check
        %p776 = pneg %p86
      $region42: #{convnet_forward.2} parent=39 // pred_check_branch
        %778 = sbr.rel (%p776) target = $region44
      $region43: #{convnet_forward.2} parent=39 // pred_region
        %s779 = smul.u32 32, %s16
        %p780 = scmp.lt.s32.totalorder %s779, 63
        %s781 = scalar_select %p780, %s779, 63
        %s782 = smul.addr %s781, 8
        %s783 = scalar_lea.vmem %s2, %s782
      $region44: #{convnet_forward.2} parent=39 // pred_fallthru
        _
      // Predicated region
      $region45: #{convnet_forward.2} parent=39 // pred_check
        %p784 = pneg %p112
      $region46: #{convnet_forward.2} parent=39 // pred_check_branch
        %786 = sbr.rel (%p784) target = $region48
      $region47: #{convnet_forward.2} parent=39 // pred_region
        %p787 = scmp.lt.s32.totalorder %s16, 1
        %s788 = scalar_select %p787, %s16, 1
        %s789 = smul.addr %s788, 2
        %s790 = scalar_lea.vmem %s3, %s789
      $region48: #{convnet_forward.2} parent=39 // pred_fallthru
        _
    $region40: #{convnet_forward.2} parent=5 // pred_fallthru
      _
  $region6: #{convnet_forward.2} parent=0 // loop_footer
    %s14 = sadd.s32 1, %s10
  $region7: #{convnet_forward.2} parent=0 // loop_footer_branch
    %9 = sbr.rel target = $region3
  $region8: #{convnet_forward.2} parent=0 // loop_exit
    _

// kernel: convnet_forward.3
$region0: #{convnet_forward.3}
  #allocation0 [shape = 'u32[]', space=smem, size = 0x4, offset = 0x4, fixed_abs, tag = 'smem constant byte address 0x4 - core index']
  #allocation1 [shape = 'u32[144,128]{1,0:T(1,128)}', space=vmem, size = 0x12000, scoped, tag = 'internal scratch']
  %s0 = inlined_call_operand.vmem [shape: f32[512,8], index: 0, kind: input, shape index: {}]
  %s1 = inlined_call_operand.vmem [shape: f32[2,8], index: 1, kind: input, shape index: {}]
  %s2 = inlined_call_operand.vmem [shape: f32[1,8], index: 2, kind: input, shape index: {}]
  %s3 = inlined_call_operand.vmem [shape: f32[1,8], index: 3, kind: input, shape index: {}]
  %s4 = inlined_call_operand.vmem [shape: f32[512,8], index: 4, kind: output, shape index: {}]
  %s5 = sld [smem:[#allocation0]]
  $region49: #{convnet_forward.3} parent=0
    _
  %s7 = ssub.s32 1, %s5
  %s8 = scalar_select 0, %s7, %s5
  loop: start=0, step=1, limit=4
  $region2: #{convnet_forward.3} parent=0 // loop_pre_header
    _
  $region3: #{convnet_forward.3} parent=0 // loop_header
    %s10 = sphi 0, %s14
    %p11 = scmp.ge.s32.totalorder %s10, 4
    %s20 = sphi 0, %s22
    %s23 = sphi 0, %s20
    %s24 = sphi 0, %s23
    %s40 = sphi 0, %s24
    %s44 = sphi 0, %s44
    %s46 = sphi 0, %s44
    %s47 = sphi 0, %s46
    %s61 = sphi 0, %s47
    %s65 = sphi 0, %s65
    %s67 = sphi 0, %s65
    %s68 = sphi 0, %s67
    %s82 = sphi 0, %s68
    %s86 = sphi 0, %s86
    %s88 = sphi 0, %s86
    %s89 = sphi 0, %s88
    %s103 = sphi 0, %s89
    %s109 = sphi 0, %s111
    %s112 = sphi 0, %s109
    %s113 = sphi 0, %s112
    %s129 = sphi 0, %s113
  $region4: #{convnet_forward.3} parent=0 // loop_header_branch
    %13 = sbr.rel (%p11) target = $region8
  $region5: #{convnet_forward.3} parent=0 // loop_body
    %s15 = ssub.s32 %s10, 1
    %s16 = ssub.s32 %s10, 2
    %s17 = sadd.s32 %s10, 1
    %s18 = ssub.s32 %s10, %s17
    %p19 = scmp.eq.s32.totalorder %s18, 0
    %s21 = sadd.s32 %s20, 1
    %s22 = scalar_select %p19, %s20, %s21
    %p25 = pneg %p19
    %p26 = scmp.eq.s32.totalorder %s10, 1
    %p27 = por %p25, %p26
    %p28 = scmp.ne.s32.totalorder %s20, %s23
    %p29 = scmp.eq.s32.totalorder %s10, 0
    %p30 = por %p28, %p29
    %p31 = scmp.ne.s32.totalorder %s20, %s23
    %p32 = scmp.eq.s32.totalorder %s15, 1
    %p33 = por %p31, %p32
    %p34 = scmp.ne.s32.totalorder %s23, %s24
    %p35 = scmp.eq.s32.totalorder %s15, 0
    %p36 = por %p34, %p35
    %p37 = scmp.ne.s32.totalorder %s23, %s24
    %p38 = scmp.eq.s32.totalorder %s16, 1
    %p39 = por %p37, %p38
    %p41 = scmp.ne.s32.totalorder %s24, %s40
    %p42 = scmp.eq.s32.totalorder %s16, 0
    %p43 = por %p41, %p42
    %s45 = sadd.s32 %s44, 1
    %p48 = scmp.eq.s32.totalorder %s10, 1
    %p49 = scmp.ne.s32.totalorder %s44, %s46
    %p50 = scmp.eq.s32.totalorder %s10, 0
    %p51 = por %p49, %p50
    %p52 = scmp.ne.s32.totalorder %s44, %s46
    %p53 = scmp.eq.s32.totalorder %s15, 1
    %p54 = por %p52, %p53
    %p55 = scmp.ne.s32.totalorder %s46, %s47
    %p56 = scmp.eq.s32.totalorder %s15, 0
    %p57 = por %p55, %p56
    %p58 = scmp.ne.s32.totalorder %s46, %s47
    %p59 = scmp.eq.s32.totalorder %s16, 1
    %p60 = por %p58, %p59
    %p62 = scmp.ne.s32.totalorder %s47, %s61
    %p63 = scmp.eq.s32.totalorder %s16, 0
    %p64 = por %p62, %p63
    %s66 = sadd.s32 %s65, 1
    %p69 = scmp.eq.s32.totalorder %s10, 1
    %p70 = scmp.ne.s32.totalorder %s65, %s67
    %p71 = scmp.eq.s32.totalorder %s10, 0
    %p72 = por %p70, %p71
    %p73 = scmp.ne.s32.totalorder %s65, %s67
    %p74 = scmp.eq.s32.totalorder %s15, 1
    %p75 = por %p73, %p74
    %p76 = scmp.ne.s32.totalorder %s67, %s68
    %p77 = scmp.eq.s32.totalorder %s15, 0
    %p78 = por %p76, %p77
    %p79 = scmp.ne.s32.totalorder %s67, %s68
    %p80 = scmp.eq.s32.totalorder %s16, 1
    %p81 = por %p79, %p80
    %p83 = scmp.ne.s32.totalorder %s68, %s82
    %p84 = scmp.eq.s32.totalorder %s16, 0
    %p85 = por %p83, %p84
    %s87 = sadd.s32 %s86, 1
    %p90 = scmp.eq.s32.totalorder %s10, 1
    %p91 = scmp.ne.s32.totalorder %s86, %s88
    %p92 = scmp.eq.s32.totalorder %s10, 0
    %p93 = por %p91, %p92
    %p94 = scmp.ne.s32.totalorder %s86, %s88
    %p95 = scmp.eq.s32.totalorder %s15, 1
    %p96 = por %p94, %p95
    %p97 = scmp.ne.s32.totalorder %s88, %s89
    %p98 = scmp.eq.s32.totalorder %s15, 0
    %p99 = por %p97, %p98
    %p100 = scmp.ne.s32.totalorder %s88, %s89
    %p101 = scmp.eq.s32.totalorder %s16, 1
    %p102 = por %p100, %p101
    %p104 = scmp.ne.s32.totalorder %s89, %s103
    %p105 = scmp.eq.s32.totalorder %s16, 0
    %p106 = por %p104, %p105
    %s107 = ssub.s32 %s10, %s17
    %p108 = scmp.eq.s32.totalorder %s107, 0
    %s110 = sadd.s32 %s109, 1
    %s111 = scalar_select %p108, %s109, %s110
    %p114 = pneg %p108
    %p115 = scmp.eq.s32.totalorder %s10, 1
    %p116 = por %p114, %p115
    %p117 = scmp.ne.s32.totalorder %s109, %s112
    %p118 = scmp.eq.s32.totalorder %s10, 0
    %p119 = por %p117, %p118
    %p120 = scmp.ne.s32.totalorder %s109, %s112
    %p121 = scmp.eq.s32.totalorder %s15, 1
    %p122 = por %p120, %p121
    %p123 = scmp.ne.s32.totalorder %s112, %s113
    %p124 = scmp.eq.s32.totalorder %s15, 0
    %p125 = por %p123, %p124
    %p126 = scmp.ne.s32.totalorder %s112, %s113
    %p127 = scmp.eq.s32.totalorder %s16, 1
    %p128 = por %p126, %p127
    %p130 = scmp.ne.s32.totalorder %s113, %s129
    %p131 = scmp.eq.s32.totalorder %s16, 0
    %p132 = por %p130, %p131
    %p133 = scmp.le.s32.totalorder 1, %s10
    %p134 = scmp.lt.s32.totalorder %s10, 3
    %p135 = pnand %p133, %p134
    %p136 = pneg %p135
    // Predicated region
    $region9: #{convnet_forward.3} parent=5 // pred_check
      _
    $region10: #{convnet_forward.3} parent=5 // pred_check_branch
      %138 = sbr.rel (%p135) target = $region12
    $region11: #{convnet_forward.3} parent=5 // pred_region
      %s139 = ssub.s32 %s10, 1
      // Predicated region
      $region13: #{convnet_forward.3} parent=11 // pred_check
        %p140 = pneg %p57
      $region14: #{convnet_forward.3} parent=11 // pred_check_branch
        %142 = sbr.rel (%p140) target = $region16
      $region15: #{convnet_forward.3} parent=11 // pred_region
        _
      $region16: #{convnet_forward.3} parent=11 // pred_fallthru
        _
      // Predicated region
      $region17: #{convnet_forward.3} parent=11 // pred_check
        %p143 = pneg %p78
      $region18: #{convnet_forward.3} parent=11 // pred_check_branch
        %145 = sbr.rel (%p143) target = $region20
      $region19: #{convnet_forward.3} parent=11 // pred_region
        _
      $region20: #{convnet_forward.3} parent=11 // pred_fallthru
        _
      // Predicated region
      $region21: #{convnet_forward.3} parent=11 // pred_check
        %p146 = pneg %p99
      $region22: #{convnet_forward.3} parent=11 // pred_check_branch
        %148 = sbr.rel (%p146) target = $region24
      $region23: #{convnet_forward.3} parent=11 // pred_region
        _
      $region24: #{convnet_forward.3} parent=11 // pred_fallthru
        _
    $region12: #{convnet_forward.3} parent=5 // pred_fallthru
      _
    %p149 = scmp.lt.s32.totalorder %s10, 2
    // Predicated region
    $region25: #{convnet_forward.3} parent=5 // pred_check
      %p150 = pneg %p149
    $region26: #{convnet_forward.3} parent=5 // pred_check_branch
      %152 = sbr.rel (%p150) target = $region28
    $region27: #{convnet_forward.3} parent=5 // pred_region
      // Predicated region
      $region29: #{convnet_forward.3} parent=27 // pred_check
        %p153 = pneg %p30
      $region30: #{convnet_forward.3} parent=27 // pred_check_branch
        %155 = sbr.rel (%p153) target = $region32
      $region31: #{convnet_forward.3} parent=27 // pred_region
        %s156 = smul.u32 32, %s10
        %p157 = scmp.lt.s32.totalorder %s156, 63
        %s158 = scalar_select %p157, %s156, 63
        %s159 = smul.addr %s158, 8
        %s160 = scalar_lea.vmem %s0, %s159
        %s161 = smul.u32 32, %s10
      $region32: #{convnet_forward.3} parent=27 // pred_fallthru
        _
    $region28: #{convnet_forward.3} parent=5 // pred_fallthru
      _
    %p162 = scmp.le.s32.totalorder 1, %s10
    %p163 = scmp.lt.s32.totalorder %s10, 3
    %p164 = pnand %p162, %p163
    %p165 = pneg %p164
    // Predicated region
    $region33: #{convnet_forward.3} parent=5 // pred_check
      _
    $region34: #{convnet_forward.3} parent=5 // pred_check_branch
      %167 = sbr.rel (%p164) target = $region36
    $region35: #{convnet_forward.3} parent=5 // pred_region
      %s168 = ssub.s32 %s10, 1
      %s169 = smul.u32 32, %s15
      %p170 = scmp.lt.s32.totalorder %s169, 63
      %s171 = scalar_select %p170, %s169, 63
      %s172 = smul.addr %s171, 8
      %s173 = scalar_lea.vmem %s0, %s172
      %p174 = pneg %p36
      %p175 = pneg %p33
      %p176 = pneg %p57
      %p177 = pneg %p54
      %p178 = pneg %p78
      %p179 = pneg %p75
      %p180 = pneg %p99
      %p181 = pneg %p96
      %p182 = pneg %p125
      %p183 = pneg %p122
      %s184 = smul.u32 32, %s15
      %p185 = scmp.lt.s32.totalorder %s184, 63
      %s186 = scalar_select %p185, %s184, 63
      %s187 = smul.addr %s186, 8
      %s188 = scalar_lea.vmem %s4, %s187
      %s189 = smul.u32 32, %s15
      %p190 = scmp.lt.s32.totalorder %s189, 63
      %s191 = scalar_select %p190, %s189, 63
      %s192 = smul.addr %s191, 8
      %s193 = scalar_lea.vmem %s0, %s192
      %s194 = smul.u32 32, %s15
      %s195 = smul.u32 32, %s15
      %p196 = scmp.lt.s32.totalorder %s195, 63
      %s197 = scalar_select %p196, %s195, 63
      %s198 = smul.addr %s197, 8
      %s199 = scalar_lea.vmem %s4, %s198
      %s200 = smul.u32 32, %s15
      %v201 = vld [vmem:[%s1] sm:$0x1]
      %v202 = vmul.f32 %v201, 0.001953125
      %v203 = vld [vmem:[%s1 + $0x1] sm:$0x1]
      %v204 = vmul.f32 %v203, 0.001953125
      %v205 = vmul.f32 %v202, %v202
      %v206 = vsub.f32 %v204, %v205
      %v207 = vld [vmem:[%s2] sm:$0x1]
      %v208 = vadd.f32 %v206, 1e-05
      %v209 = vrsqrt.pop %v208
      %v210 = vmul.f32 %v207, %v209
      %v211 = vld [vmem:[%s3] sm:$0x1]
      %v212 = vmul.f32 %v202, %v210
      %v213 = vsub.f32 %v211, %v212
      %v214 = vld [vmem:[%s193] sm:$0xff]
      %v215 = vld [vmem:[%s193 + $0x8] sm:$0xff]
      %v216 = vld [vmem:[%s193 + $0x10] sm:$0xff]
      %v217 = vld [vmem:[%s193 + $0x18] sm:$0xff]
      %v218 = vld [vmem:[%s193 + $0x20] sm:$0xff]
      %v219 = vld [vmem:[%s193 + $0x28] sm:$0xff]
      %v220 = vld [vmem:[%s193 + $0x30] sm:$0xff]
      %v221 = vld [vmem:[%s193 + $0x38] sm:$0xff]
      %v222 = vld [vmem:[%s193 + $0x40] sm:$0xff]
      %v223 = vld [vmem:[%s193 + $0x48] sm:$0xff]
      %v224 = vld [vmem:[%s193 + $0x50] sm:$0xff]
      %v225 = vld [vmem:[%s193 + $0x58] sm:$0xff]
      %v226 = vld [vmem:[%s193 + $0x60] sm:$0xff]
      %v227 = vld [vmem:[%s193 + $0x68] sm:$0xff]
      %v228 = vld [vmem:[%s193 + $0x70] sm:$0xff]
      %v229 = vld [vmem:[%s193 + $0x78] sm:$0xff]
      %v230 = vld [vmem:[%s193 + $0x80] sm:$0xff]
      %v231 = vld [vmem:[%s193 + $0x88] sm:$0xff]
      %v232 = vld [vmem:[%s193 + $0x90] sm:$0xff]
      %v233 = vld [vmem:[%s193 + $0x98] sm:$0xff]
      %v234 = vld [vmem:[%s193 + $0xa0] sm:$0xff]
      %v235 = vld [vmem:[%s193 + $0xa8] sm:$0xff]
      %v236 = vld [vmem:[%s193 + $0xb0] sm:$0xff]
      %v237 = vld [vmem:[%s193 + $0xb8] sm:$0xff]
      %v238 = vld [vmem:[%s193 + $0xc0] sm:$0xff]
      %v239 = vld [vmem:[%s193 + $0xc8] sm:$0xff]
      %v240 = vld [vmem:[%s193 + $0xd0] sm:$0xff]
      %v241 = vld [vmem:[%s193 + $0xd8] sm:$0xff]
      %v242 = vld [vmem:[%s193 + $0xe0] sm:$0xff]
      %v243 = vld [vmem:[%s193 + $0xe8] sm:$0xff]
      %v244 = vld [vmem:[%s193 + $0xf0] sm:$0xff]
      %v245 = vld [vmem:[%s193 + $0xf8] sm:$0xff]
      %v247 = vlaneseq
      %v248 = vshrl.u32 %v247, 7
      %v249 = vsub.s32 0, %v248
      %v250 = vrot.slane %v210, %v249
      %v252 = vmul.f32 %v214, %v250
      %v253 = vmul.f32 %v215, %v250
      %v254 = vmul.f32 %v216, %v250
      %v255 = vmul.f32 %v217, %v250
      %v256 = vmul.f32 %v218, %v250
      %v257 = vmul.f32 %v219, %v250
      %v258 = vmul.f32 %v220, %v250
      %v259 = vmul.f32 %v221, %v250
      %v260 = vmul.f32 %v222, %v250
      %v261 = vmul.f32 %v223, %v250
      %v262 = vmul.f32 %v224, %v250
      %v263 = vmul.f32 %v225, %v250
      %v264 = vmul.f32 %v226, %v250
      %v265 = vmul.f32 %v227, %v250
      %v266 = vmul.f32 %v228, %v250
      %v267 = vmul.f32 %v229, %v250
      %v268 = vmul.f32 %v230, %v250
      %v269 = vmul.f32 %v231, %v250
      %v270 = vmul.f32 %v232, %v250
      %v271 = vmul.f32 %v233, %v250
      %v272 = vmul.f32 %v234, %v250
      %v273 = vmul.f32 %v235, %v250
      %v274 = vmul.f32 %v236, %v250
      %v275 = vmul.f32 %v237, %v250
      %v276 = vmul.f32 %v238, %v250
      %v277 = vmul.f32 %v239, %v250
      %v278 = vmul.f32 %v240, %v250
      %v279 = vmul.f32 %v241, %v250
      %v280 = vmul.f32 %v242, %v250
      %v281 = vmul.f32 %v243, %v250
      %v282 = vmul.f32 %v244, %v250
      %v283 = vmul.f32 %v245, %v250
      %v285 = vlaneseq
      %v286 = vshrl.u32 %v285, 7
      %v287 = vsub.s32 0, %v286
      %v288 = vrot.slane %v213, %v287
      %v290 = vadd.f32 %v252, %v288
      %v291 = vadd.f32 %v253, %v288
      %v292 = vadd.f32 %v254, %v288
      %v293 = vadd.f32 %v255, %v288
      %v294 = vadd.f32 %v256, %v288
      %v295 = vadd.f32 %v257, %v288
      %v296 = vadd.f32 %v258, %v288
      %v297 = vadd.f32 %v259, %v288
      %v298 = vadd.f32 %v260, %v288
      %v299 = vadd.f32 %v261, %v288
      %v300 = vadd.f32 %v262, %v288
      %v301 = vadd.f32 %v263, %v288
      %v302 = vadd.f32 %v264, %v288
      %v303 = vadd.f32 %v265, %v288
      %v304 = vadd.f32 %v266, %v288
      %v305 = vadd.f32 %v267, %v288
      %v306 = vadd.f32 %v268, %v288
      %v307 = vadd.f32 %v269, %v288
      %v308 = vadd.f32 %v270, %v288
      %v309 = vadd.f32 %v271, %v288
      %v310 = vadd.f32 %v272, %v288
      %v311 = vadd.f32 %v273, %v288
      %v312 = vadd.f32 %v274, %v288
      %v313 = vadd.f32 %v275, %v288
      %v314 = vadd.f32 %v276, %v288
      %v315 = vadd.f32 %v277, %v288
      %v316 = vadd.f32 %v278, %v288
      %v317 = vadd.f32 %v279, %v288
      %v318 = vadd.f32 %v280, %v288
      %v319 = vadd.f32 %v281, %v288
      %v320 = vadd.f32 %v282, %v288
      %v321 = vadd.f32 %v283, %v288
      %vm322 = vcmp.ge.f32.partialorder %v290, 0.0
      %vm323 = vcmp.ge.f32.partialorder %v291, 0.0
      %vm324 = vcmp.ge.f32.partialorder %v292, 0.0
      %vm325 = vcmp.ge.f32.partialorder %v293, 0.0
      %vm326 = vcmp.ge.f32.partialorder %v294, 0.0
      %vm327 = vcmp.ge.f32.partialorder %v295, 0.0
      %vm328 = vcmp.ge.f32.partialorder %v296, 0.0
      %vm329 = vcmp.ge.f32.partialorder %v297, 0.0
      %vm330 = vcmp.ge.f32.partialorder %v298, 0.0
      %vm331 = vcmp.ge.f32.partialorder %v299, 0.0
      %vm332 = vcmp.ge.f32.partialorder %v300, 0.0
      %vm333 = vcmp.ge.f32.partialorder %v301, 0.0
      %vm334 = vcmp.ge.f32.partialorder %v302, 0.0
      %vm335 = vcmp.ge.f32.partialorder %v303, 0.0
      %vm336 = vcmp.ge.f32.partialorder %v304, 0.0
      %vm337 = vcmp.ge.f32.partialorder %v305, 0.0
      %vm338 = vcmp.ge.f32.partialorder %v306, 0.0
      %vm339 = vcmp.ge.f32.partialorder %v307, 0.0
      %vm340 = vcmp.ge.f32.partialorder %v308, 0.0
      %vm341 = vcmp.ge.f32.partialorder %v309, 0.0
      %vm342 = vcmp.ge.f32.partialorder %v310, 0.0
      %vm343 = vcmp.ge.f32.partialorder %v311, 0.0
      %vm344 = vcmp.ge.f32.partialorder %v312, 0.0
      %vm345 = vcmp.ge.f32.partialorder %v313, 0.0
      %vm346 = vcmp.ge.f32.partialorder %v314, 0.0
      %vm347 = vcmp.ge.f32.partialorder %v315, 0.0
      %vm348 = vcmp.ge.f32.partialorder %v316, 0.0
      %vm349 = vcmp.ge.f32.partialorder %v317, 0.0
      %vm350 = vcmp.ge.f32.partialorder %v318, 0.0
      %vm351 = vcmp.ge.f32.partialorder %v319, 0.0
      %vm352 = vcmp.ge.f32.partialorder %v320, 0.0
      %vm353 = vcmp.ge.f32.partialorder %v321, 0.0
      %v354 = vmul.f32 %v290, 0.1
      %v355 = vmul.f32 %v291, 0.1
      %v356 = vmul.f32 %v292, 0.1
      %v357 = vmul.f32 %v293, 0.1
      %v358 = vmul.f32 %v294, 0.1
      %v359 = vmul.f32 %v295, 0.1
      %v360 = vmul.f32 %v296, 0.1
      %v361 = vmul.f32 %v297, 0.1
      %v362 = vmul.f32 %v298, 0.1
      %v363 = vmul.f32 %v299, 0.1
      %v364 = vmul.f32 %v300, 0.1
      %v365 = vmul.f32 %v301, 0.1
      %v366 = vmul.f32 %v302, 0.1
      %v367 = vmul.f32 %v303, 0.1
      %v368 = vmul.f32 %v304, 0.1
      %v369 = vmul.f32 %v305, 0.1
      %v370 = vmul.f32 %v306, 0.1
      %v371 = vmul.f32 %v307, 0.1
      %v372 = vmul.f32 %v308, 0.1
      %v373 = vmul.f32 %v309, 0.1
      %v374 = vmul.f32 %v310, 0.1
      %v375 = vmul.f32 %v311, 0.1
      %v376 = vmul.f32 %v312, 0.1
      %v377 = vmul.f32 %v313, 0.1
      %v378 = vmul.f32 %v314, 0.1
      %v379 = vmul.f32 %v315, 0.1
      %v380 = vmul.f32 %v316, 0.1
      %v381 = vmul.f32 %v317, 0.1
      %v382 = vmul.f32 %v318, 0.1
      %v383 = vmul.f32 %v319, 0.1
      %v384 = vmul.f32 %v320, 0.1
      %v385 = vmul.f32 %v321, 0.1
      %v386 = vsel %vm322, %v290, %v354
      %v387 = vsel %vm323, %v291, %v355
      %v388 = vsel %vm324, %v292, %v356
      %v389 = vsel %vm325, %v293, %v357
      %v390 = vsel %vm326, %v294, %v358
      %v391 = vsel %vm327, %v295, %v359
      %v392 = vsel %vm328, %v296, %v360
      %v393 = vsel %vm329, %v297, %v361
      %v394 = vsel %vm330, %v298, %v362
      %v395 = vsel %vm331, %v299, %v363
      %v396 = vsel %vm332, %v300, %v364
      %v397 = vsel %vm333, %v301, %v365
      %v398 = vsel %vm334, %v302, %v366
      %v399 = vsel %vm335, %v303, %v367
      %v400 = vsel %vm336, %v304, %v368
      %v401 = vsel %vm337, %v305, %v369
      %v402 = vsel %vm338, %v306, %v370
      %v403 = vsel %vm339, %v307, %v371
      %v404 = vsel %vm340, %v308, %v372
      %v405 = vsel %vm341, %v309, %v373
      %v406 = vsel %vm342, %v310, %v374
      %v407 = vsel %vm343, %v311, %v375
      %v408 = vsel %vm344, %v312, %v376
      %v409 = vsel %vm345, %v313, %v377
      %v410 = vsel %vm346, %v314, %v378
      %v411 = vsel %vm347, %v315, %v379
      %v412 = vsel %vm348, %v316, %v380
      %v413 = vsel %vm349, %v317, %v381
      %v414 = vsel %vm350, %v318, %v382
      %v415 = vsel %vm351, %v319, %v383
      %v416 = vsel %vm352, %v320, %v384
      %v417 = vsel %vm353, %v321, %v385
      %vm418 = vcmask 64512
      %419 = vst.msk [vmem:[%s199] sm:$0xff] %vm418, %v386
      %420 = vst.msk [vmem:[%s199 + $0x8] sm:$0xff] %vm418, %v387
      %421 = vst.msk [vmem:[%s199 + $0x10] sm:$0xff] %vm418, %v388
      %422 = vst.msk [vmem:[%s199 + $0x18] sm:$0xff] %vm418, %v389
      %423 = vst.msk [vmem:[%s199 + $0x20] sm:$0xff] %vm418, %v390
      %424 = vst.msk [vmem:[%s199 + $0x28] sm:$0xff] %vm418, %v391
      %425 = vst.msk [vmem:[%s199 + $0x30] sm:$0xff] %vm418, %v392
      %426 = vst.msk [vmem:[%s199 + $0x38] sm:$0xff] %vm418, %v393
      %427 = vst.msk [vmem:[%s199 + $0x40] sm:$0xff] %vm418, %v394
      %428 = vst.msk [vmem:[%s199 + $0x48] sm:$0xff] %vm418, %v395
      %429 = vst.msk [vmem:[%s199 + $0x50] sm:$0xff] %vm418, %v396
      %430 = vst.msk [vmem:[%s199 + $0x58] sm:$0xff] %vm418, %v397
      %431 = vst.msk [vmem:[%s199 + $0x60] sm:$0xff] %vm418, %v398
      %432 = vst.msk [vmem:[%s199 + $0x68] sm:$0xff] %vm418, %v399
      %433 = vst.msk [vmem:[%s199 + $0x70] sm:$0xff] %vm418, %v400
      %434 = vst.msk [vmem:[%s199 + $0x78] sm:$0xff] %vm418, %v401
      %435 = vst.msk [vmem:[%s199 + $0x80] sm:$0xff] %vm418, %v402
      %436 = vst.msk [vmem:[%s199 + $0x88] sm:$0xff] %vm418, %v403
      %437 = vst.msk [vmem:[%s199 + $0x90] sm:$0xff] %vm418, %v404
      %438 = vst.msk [vmem:[%s199 + $0x98] sm:$0xff] %vm418, %v405
      %439 = vst.msk [vmem:[%s199 + $0xa0] sm:$0xff] %vm418, %v406
      %440 = vst.msk [vmem:[%s199 + $0xa8] sm:$0xff] %vm418, %v407
      %441 = vst.msk [vmem:[%s199 + $0xb0] sm:$0xff] %vm418, %v408
      %442 = vst.msk [vmem:[%s199 + $0xb8] sm:$0xff] %vm418, %v409
      %443 = vst.msk [vmem:[%s199 + $0xc0] sm:$0xff] %vm418, %v410
      %444 = vst.msk [vmem:[%s199 + $0xc8] sm:$0xff] %vm418, %v411
      %445 = vst.msk [vmem:[%s199 + $0xd0] sm:$0xff] %vm418, %v412
      %446 = vst.msk [vmem:[%s199 + $0xd8] sm:$0xff] %vm418, %v413
      %447 = vst.msk [vmem:[%s199 + $0xe0] sm:$0xff] %vm418, %v414
      %448 = vst.msk [vmem:[%s199 + $0xe8] sm:$0xff] %vm418, %v415
      %449 = vst.msk [vmem:[%s199 + $0xf0] sm:$0xff] %vm418, %v416
      %450 = vst.msk [vmem:[%s199 + $0xf8] sm:$0xff] %vm418, %v417
      %s451 = smul.u32 32, %s15
      %p452 = scmp.lt.s32.totalorder %s451, 63
      %s453 = scalar_select %p452, %s451, 63
      %s454 = smul.addr %s453, 8
      %s455 = scalar_lea.vmem %s4, %s454
      // Predicated region
      $region37: #{convnet_forward.3} parent=35 // pred_check
        %p456 = pneg %p122
      $region38: #{convnet_forward.3} parent=35 // pred_check_branch
        %458 = sbr.rel (%p456) target = $region40
      $region39: #{convnet_forward.3} parent=35 // pred_region
        %s459 = smul.u32 32, %s15
      $region40: #{convnet_forward.3} parent=35 // pred_fallthru
        _
    $region36: #{convnet_forward.3} parent=5 // pred_fallthru
      _
    %p460 = scmp.le.s32.totalorder 2, %s10
    // Predicated region
    $region41: #{convnet_forward.3} parent=5 // pred_check
      %p461 = pneg %p460
    $region42: #{convnet_forward.3} parent=5 // pred_check_branch
      %463 = sbr.rel (%p461) target = $region44
    $region43: #{convnet_forward.3} parent=5 // pred_region
      %s464 = ssub.s32 %s10, 2
      // Predicated region
      $region45: #{convnet_forward.3} parent=43 // pred_check
        %p465 = pneg %p128
      $region46: #{convnet_forward.3} parent=43 // pred_check_branch
        %467 = sbr.rel (%p465) target = $region48
      $region47: #{convnet_forward.3} parent=43 // pred_region
        %s468 = smul.u32 32, %s16
        %p469 = scmp.lt.s32.totalorder %s468, 63
        %s470 = scalar_select %p469, %s468, 63
        %s471 = smul.addr %s470, 8
        %s472 = scalar_lea.vmem %s4, %s471
      $region48: #{convnet_forward.3} parent=43 // pred_fallthru
        _
    $region44: #{convnet_forward.3} parent=5 // pred_fallthru
      _
  $region6: #{convnet_forward.3} parent=0 // loop_footer
    %s14 = sadd.s32 1, %s10
  $region7: #{convnet_forward.3} parent=0 // loop_footer_branch
    %9 = sbr.rel target = $region3
  $region8: #{convnet_forward.3} parent=0 // loop_exit
    _

</llo_original>
